<compile_context>
chip_gen: v5e
topology: v5e:2x2
jax: 0.10.0
libtpu: 0.0.40
codegen_flags: <defaults>
</compile_context>

<pallas_src>
import jax
import jax.numpy as jnp
from jax.experimental import pallas as pl
from jax.experimental.pallas import tpu as pltpu

input_size = 4
output_size = 3

_SUBLANE = 8        # sublane count (second-to-last dim of a vreg)
_MAX_TM = 4096      # max rows per batch tile (a (4096, 4) f32 tile is 64 KiB)
_TARGET_TILES = 4   # aim for >= 4 batch tiles so both v7x TensorCores get work


def _round_up(x, m):
    return (x + m - 1) // m * m


def _choose_tile(B):
    """Rows per batch tile: a multiple of 8 (or == B when B <= 8), <= _MAX_TM."""
    if B <= _SUBLANE:
        return B                      # block dim == full array dim: always legal
    tm = _round_up(pl.cdiv(B, _TARGET_TILES), _SUBLANE)
    return max(_SUBLANE, min(tm, _MAX_TM))


def _linear_kernel(x_ref, w_ref, b_ref, o_ref):
    # x_ref: (tm, K)   w_ref: (K, N) pre-transposed   b_ref: (1, N)   o_ref: (tm, N)
    y = jnp.dot(x_ref[...], w_ref[...], preferred_element_type=jnp.float32)
    o_ref[...] = (y + b_ref[...]).astype(o_ref.dtype)   # f32 epilogue (v5e-safe)


def prepare_params(weight, bias):
    """One-time (per parameter update) re-layout, hoisted out of the hot path.

    weight: (output_size, input_size) -> (input_size, output_size)
    bias:   (output_size,)            -> (1, output_size)
    """
    w_t = jnp.asarray(weight, jnp.float32).T
    b2d = jnp.asarray(bias, jnp.float32).reshape(1, -1)
    return w_t, b2d


def ann_linear_forward(x, w_t, b2d):
    """x: (B, input_size) f32; w_t: (input_size, output_size); b2d: (1, output_size).

    Returns (B, output_size) f32, matching torch.nn.Linear / AnnLinear.forward.
    """
    B, K = x.shape
    N = w_t.shape[1]

    tm = _choose_tile(B)
    grid = (pl.cdiv(B, tm),)          # ragged last tile: Pallas masks the writeback

    return pl.pallas_call(
        _linear_kernel,
        out_shape=jax.ShapeDtypeStruct((B, N), jnp.float32),
        grid_spec=pltpu.PrefetchScalarGridSpec(
            num_scalar_prefetch=0,
            grid=grid,
            in_specs=[
                pl.BlockSpec((tm, K), lambda i: (i, 0)),   # x tile, true K (no pad)
                pl.BlockSpec((K, N), lambda i: (0, 0)),    # weight, resident
                pl.BlockSpec((1, N), lambda i: (0, 0)),    # bias, resident
            ],
            out_specs=pl.BlockSpec((tm, N), lambda i: (i, 0)),
        ),
        compiler_params=pltpu.CompilerParams(
            dimension_semantics=("parallel",),   # batch tiles shard across TCs
        ),
    )(x, w_t, b2d)


def init_params(key):
    """Deterministic init mimicking nn.Linear default: U(-1/sqrt(in), 1/sqrt(in))."""
    kw, kb = jax.random.split(key)
    bound = 1.0 / jnp.sqrt(jnp.float32(input_size))
    weight = jax.random.uniform(
        kw, (output_size, input_size), jnp.float32, minval=-bound, maxval=bound
    )
    bias = jax.random.uniform(
        kb, (output_size,), jnp.float32, minval=-bound, maxval=bound
    )
    return weight, bias


if __name__ == "__main__":
    key = jax.random.PRNGKey(0)
    kx, kp = jax.random.split(key)
    batch = 8
    x = jax.random.normal(kx, (batch, input_size), jnp.float32)
    weight, bias = init_params(kp)

    w_t, b2d = prepare_params(weight, bias)     # hoisted param re-layout (once)
    y = ann_linear_forward(x, w_t, b2d)
    y = jax.block_until_ready(y)

    # Reference check (plain JAX), same semantics as PyTorch nn.Linear.
    y_ref = x @ weight.T + bias
    assert y.shape == (batch, output_size)
    assert jnp.allclose(y, y_ref, atol=1e-5, rtol=1e-5)
    print("KERNEL_OK")
</pallas_src>

<mosaic_0001>
module attributes {stable_mosaic.version = 11 : i64} {
  func.func @_linear_kernel(%arg0: i32, %arg1: memref<8x4xf32, #tpu.memory_space<vmem>>, %arg2: memref<4x3xf32, #tpu.memory_space<vmem>>, %arg3: memref<1x3xf32, #tpu.memory_space<vmem>>, %arg4: memref<8x3xf32, #tpu.memory_space<vmem>>) attributes {dimension_semantics = [#tpu.dimension_semantics<parallel>], iteration_bounds = array<i64: 1>, scalar_prefetch = 0 : i64, scratch_operands = 0 : i64, tpu.core_type = #tpu.core_type<tc>, window_params = [{transform_indices = @transform_0, window_bounds = array<i64: 8, 4>}, {pipeline_mode = #tpu.pipeline_mode<synchronous>, transform_indices = @transform_1, window_bounds = array<i64: 4, 3>}, {pipeline_mode = #tpu.pipeline_mode<synchronous>, transform_indices = @transform_2, window_bounds = array<i64: 1, 3>}, {transform_indices = @transform_3, window_bounds = array<i64: 8, 3>}]} {
    %c0 = arith.constant 0 : index
    %c0_0 = arith.constant 0 : index
    %0 = vector.load %arg1[%c0, %c0_0] : memref<8x4xf32, #tpu.memory_space<vmem>>, vector<8x4xf32>
    %c0_1 = arith.constant 0 : index
    %c0_2 = arith.constant 0 : index
    %1 = vector.load %arg2[%c0_1, %c0_2] : memref<4x3xf32, #tpu.memory_space<vmem>>, vector<4x3xf32>
    %cst = arith.constant dense<0.000000e+00> : vector<8x3xf32>
    %2 = tpu.matmul %0, %1, %cst {dimension_numbers = #tpu.dot_dimension_numbers<[1], [0], [0], [1], [0, 0, 1, 1], [], []>} : vector<8x4xf32>, vector<4x3xf32>, vector<8x3xf32> -> vector<8x3xf32>
    %c0_3 = arith.constant 0 : index
    %c0_4 = arith.constant 0 : index
    %3 = vector.load %arg3[%c0_3, %c0_4] : memref<1x3xf32, #tpu.memory_space<vmem>>, vector<1x3xf32>
    %4 = vector.broadcast %3 : vector<1x3xf32> to vector<8x3xf32>
    %5 = arith.addf %2, %4 : vector<8x3xf32>
    %c0_5 = arith.constant 0 : index
    %c0_6 = arith.constant 0 : index
    %6 = vector.load %arg4[%c0_5, %c0_6] : memref<8x3xf32, #tpu.memory_space<vmem>>, vector<8x3xf32>
    tpu.vector_store %arg4[%c0_5, %c0_6], %5 {strides = array<i32>} : memref<8x3xf32, #tpu.memory_space<vmem>>, vector<8x3xf32>,
    return
  }
  func.func @transform_0(%arg0: i32) -> (i32, i32) {
    %c0_i32 = arith.constant 0 : i32
    %c0_i32_0 = arith.constant 0 : i32
    return %arg0, %c0_i32 : i32, i32
  }
  func.func @transform_1(%arg0: i32) -> (i32, i32) {
    %c0_i32 = arith.constant 0 : i32
    %c0_i32_0 = arith.constant 0 : i32
    %c0_i32_1 = arith.constant 0 : i32
    return %c0_i32, %c0_i32_0 : i32, i32
  }
  func.func @transform_2(%arg0: i32) -> (i32, i32) {
    %c0_i32 = arith.constant 0 : i32
    %c0_i32_0 = arith.constant 0 : i32
    %c0_i32_1 = arith.constant 0 : i32
    return %c0_i32, %c0_i32_0 : i32, i32
  }
  func.func @transform_3(%arg0: i32) -> (i32, i32) {
    %c0_i32 = arith.constant 0 : i32
    %c0_i32_0 = arith.constant 0 : i32
    return %arg0, %c0_i32 : i32, i32
  }
}

</mosaic_0001>

<llo_original>
// kernel: tpu_custom_call.1
$region0: #{tpu_custom_call.1}
  #allocation0 [shape = 'u32[]', space=smem, size = 0x4, offset = 0x4, fixed_abs, tag = 'smem constant byte address 0x4 - core index']
  #allocation1 [shape = 'u32[72,128]{1,0:T(1,128)}', space=vmem, size = 0x9000, scoped, tag = 'internal scratch']
  %s0 = inlined_call_operand.vmem [shape: f32[8,4], index: 0, kind: input, shape index: {}]
  %s1 = inlined_call_operand.vmem [shape: f32[4,3], index: 1, kind: input, shape index: {}]
  %s2 = inlined_call_operand.vmem [shape: f32[1,3], index: 2, kind: input, shape index: {}]
  %s3 = inlined_call_operand.vmem [shape: f32[8,3], index: 3, kind: output, shape index: {}]
  %s4 = sld [smem:[#allocation0]]
  $region22: #{tpu_custom_call.1} parent=0
    _
  %s6 = ssub.s32 1, %s4
  %s7 = scalar_select 0, %s6, %s4
  // Predicated region
  $region2: #{tpu_custom_call.1} parent=0 // pred_check
    _
  $region3: #{tpu_custom_call.1} parent=0 // pred_check_branch
    %9 = sbr.rel (0) target = $region5
  $region4: #{tpu_custom_call.1} parent=0 // pred_region
    _
  $region5: #{tpu_custom_call.1} parent=0 // pred_fallthru
    _
  // Predicated region
  $region6: #{tpu_custom_call.1} parent=0 // pred_check
    _
  $region7: #{tpu_custom_call.1} parent=0 // pred_check_branch
    %11 = sbr.rel (0) target = $region9
  $region8: #{tpu_custom_call.1} parent=0 // pred_region
    _
  $region9: #{tpu_custom_call.1} parent=0 // pred_fallthru
    _
  // Predicated region
  $region10: #{tpu_custom_call.1} parent=0 // pred_check
    _
  $region11: #{tpu_custom_call.1} parent=0 // pred_check_branch
    %13 = sbr.rel (0) target = $region13
  $region12: #{tpu_custom_call.1} parent=0 // pred_region
    _
  $region13: #{tpu_custom_call.1} parent=0 // pred_fallthru
    _
  %v14 = vld [vmem:[%s0] sm:$0xff]
  %v15 = vld [vmem:[%s1] sm:$0xf]
  %v16 = vld [vmem:[%s2] sm:$0x1]
  %v18 = vperm.slane %v16, 0
  %vm20 = vcmask 31744
  %v22 = vsel %vm20, %v14, 0
  %vm24 = vcmask 1043456
  %v26 = vsel %vm24, %v15, 0
  %28 = vmatpush.msra.mxu0 0.0
  %29 = vmatpush.msra.mxu0 0.0
  %30 = vmatpush.msra.mxu0 0.0
  %31 = vmatpush.msra.mxu0 0.0
  %32 = vmatpush.msra.mxu0 0.0
  %33 = vmatpush.msra.mxu0 0.0
  %34 = vmatpush.msra.mxu0 0.0
  %35 = vmatpush.msra.mxu0 0.0
  %36 = vmatpush.msra.mxu0 0.0
  %37 = vmatpush.msra.mxu0 0.0
  %38 = vmatpush.msra.mxu0 0.0
  %39 = vmatpush.msra.mxu0 0.0
  %40 = vmatpush.msra.mxu0 0.0
  %41 = vmatpush.msra.mxu0 0.0
  %42 = vmatpush.msra.mxu0 0.0
  %43 = vmatpush.msra.mxu0 %v26
  %44 = vmatmul.f32.gmra.mxu0 %v22
  %v45 = vpop.f32.mrf.mxu0
  %v46 = vadd.f32 %v18, %v45
  %47 = vdwg.mxu0
  %vm48 = vcmask 23552
  %49 = vst.msk [vmem:[%s3] sm:$0xff] %vm48, %v46
  // Predicated region
  $region14: #{tpu_custom_call.1} parent=0 // pred_check
    _
  $region15: #{tpu_custom_call.1} parent=0 // pred_check_branch
    %51 = sbr.rel (0) target = $region17
  $region16: #{tpu_custom_call.1} parent=0 // pred_region
    _
  $region17: #{tpu_custom_call.1} parent=0 // pred_fallthru
    _
  // Predicated region
  $region18: #{tpu_custom_call.1} parent=0 // pred_check
    _
  $region19: #{tpu_custom_call.1} parent=0 // pred_check_branch
    %53 = sbr.rel (0) target = $region21
  $region20: #{tpu_custom_call.1} parent=0 // pred_region
    _
  $region21: #{tpu_custom_call.1} parent=0 // pred_fallthru
    _

</llo_original>
